<compile_context>
chip_gen: v7x
topology: tpu7x:2x2x1
jax: 0.10.0
libtpu: 0.0.40
codegen_flags: <defaults>
</compile_context>

<pallas_src>
import math

import jax
import jax.numpy as jnp
from jax.experimental import pallas as pl
from jax.experimental.pallas import tpu as pltpu

C_IN = 128          # fixed by the module (Conv2d(128, ...))
C_OUT = 6           # 1 (score) + 4 (loc) + 1 (angle), fused into one matmul
SCOPE = 512.0
LANE = 128


def _output_kernel(x_ref, w_ref, c_ref, score_ref, geo_ref):
    # x_ref:     (1, 128, TL)  input channels x spatial tile
    # w_ref:     (6, 128)      fused conv weights, transposed (resident)
    # c_ref:     (6, 3)        per-output-channel [bias, scale, shift] (resident)
    # score_ref: (1, 1, TL)    lane-dense output tile (NCHW-flat)
    # geo_ref:   (1, 5, TL)
    y = jnp.dot(w_ref[...], x_ref[0], preferred_element_type=jnp.float32)  # (6, TL)
    c = c_ref[...]                                   # (6, 3), f32
    s = jax.nn.sigmoid(y + c[:, 0:1])                # bias applied pre-sigmoid
    out = s * c[:, 1:2] + c[:, 2:3]                  # per-channel affine
    score_ref[0] = out[0:1]                          # sigmoid(conv1(x))
    geo_ref[0] = out[1:6]                            # [loc*512, (angle-0.5)*pi]


def output_forward(x_nchw, w_fused, b_fused, *, tl=8192):
    """x_nchw: (N, 128, H, W) float32 or bfloat16.

    Returns (score (N,1,H,W), geo (N,5,H,W)) matching the PyTorch module
    (outputs are float32).
    """
    N, C, H, W = x_nchw.shape
    assert C == C_IN
    hw = H * W

    # Free view of NCHW as (N, C, HW); no transpose, no pad, no HBM copy.
    x = x_nchw.reshape(N, C_IN, hw)

    # Spatial tile: 128-aligned, clamped to the lane-aligned spatial extent.
    hw_128 = ((hw + LANE - 1) // LANE) * LANE
    tl = min(max(int(tl), LANE), hw_128)
    tl = ((tl + LANE - 1) // LANE) * LANE
    # v7x has two TensorCores: when N == 1 make sure the grid has >= 2 steps
    # so ("parallel", "parallel") can actually shard work across them.
    if N == 1:
        while pl.cdiv(hw, tl) < 2 and tl > 1024:
            tl = max(1024, ((tl // 2 + LANE - 1) // LANE) * LANE)

    grid = (N, pl.cdiv(hw, tl))

    # Fused weights transposed for the (6,128) x (128,TL) matmul; match the
    # activation dtype (bf16 activations -> bf16 MXU operands, f32 accumulate).
    w_t = jnp.transpose(w_fused).astype(x.dtype)     # (6, 128)

    # Single small constants array: columns = [bias, scale, shift] per channel
    # (channel order: [score, loc0..loc3, angle]).
    scale = jnp.array([1.0, SCOPE, SCOPE, SCOPE, SCOPE, math.pi], jnp.float32)
    shift = jnp.array([0.0, 0.0, 0.0, 0.0, 0.0, -0.5 * math.pi], jnp.float32)
    consts = jnp.stack(
        [b_fused.reshape(C_OUT).astype(jnp.float32), scale, shift], axis=1)  # (6, 3)

    score, geo = pl.pallas_call(
        _output_kernel,
        out_shape=(
            jax.ShapeDtypeStruct((N, 1, hw), jnp.float32),
            jax.ShapeDtypeStruct((N, 5, hw), jnp.float32),
        ),
        grid_spec=pltpu.PrefetchScalarGridSpec(
            num_scalar_prefetch=0,
            grid=grid,
            in_specs=[
                pl.BlockSpec((1, C_IN, tl), lambda n, j: (n, 0, j)),
                pl.BlockSpec((C_OUT, C_IN), lambda n, j: (0, 0)),   # resident
                pl.BlockSpec((C_OUT, 3), lambda n, j: (0, 0)),      # resident
            ],
            out_specs=(
                pl.BlockSpec((1, 1, tl), lambda n, j: (n, 0, j)),
                pl.BlockSpec((1, 5, tl), lambda n, j: (n, 0, j)),
            ),
        ),
        compiler_params=pltpu.CompilerParams(
            dimension_semantics=("parallel", "parallel")),
    )(x, w_t, consts)

    # Contiguous, free reshapes back to NCHW.
    return score.reshape(N, 1, H, W), geo.reshape(N, 5, H, W)


def init_params(key):
    """Deterministic kaiming_normal_(mode='fan_out', relu) for the three 1x1
    convs; biases zero. Fused weight shape (128, 6): cols = [score, loc*4, angle]."""
    k1, k2, k3 = jax.random.split(key, 3)
    # fan_out = out_channels * 1 * 1 ; std = sqrt(2 / fan_out)
    w1 = jax.random.normal(k1, (C_IN, 1), jnp.float32) * math.sqrt(2.0 / 1.0)
    w2 = jax.random.normal(k2, (C_IN, 4), jnp.float32) * math.sqrt(2.0 / 4.0)
    w3 = jax.random.normal(k3, (C_IN, 1), jnp.float32) * math.sqrt(2.0 / 1.0)
    w_fused = jnp.concatenate([w1, w2, w3], axis=1)          # (128, 6)
    b_fused = jnp.zeros((1, C_OUT), jnp.float32)
    return w_fused, b_fused


if __name__ == "__main__":
    key = jax.random.PRNGKey(0)
    kx, kp = jax.random.split(key)

    N, H, W = 2, 16, 16
    x = jax.random.normal(kx, (N, C_IN, H, W), jnp.float32)
    w_fused, b_fused = init_params(kp)

    fwd = jax.jit(output_forward, static_argnames=("tl",))
    score, geo = fwd(x, w_fused, b_fused)
    jax.block_until_ready((score, geo))

    assert score.shape == (N, 1, H, W)
    assert geo.shape == (N, 5, H, W)

    # quick sanity check against plain-JAX reference
    xf = jnp.transpose(x, (0, 2, 3, 1)).reshape(-1, C_IN)
    y_ref = jax.nn.sigmoid(xf @ w_fused + b_fused)
    y_ref = y_ref * jnp.array([1.0, 512.0, 512.0, 512.0, 512.0, math.pi]) + jnp.array(
        [0.0, 0.0, 0.0, 0.0, 0.0, -0.5 * math.pi])
    y_ref = jnp.transpose(y_ref.reshape(N, H, W, C_OUT), (0, 3, 1, 2))
    assert jnp.allclose(score, y_ref[:, 0:1], atol=1e-4, rtol=1e-4)
    assert jnp.allclose(geo, y_ref[:, 1:6], atol=1e-3, rtol=1e-4)

    print("KERNEL_OK")
</pallas_src>

<mosaic_0001>
module attributes {stable_mosaic.version = 11 : i64} {
  func.func @_output_kernel(%arg0: i32, %arg1: i32, %arg2: memref<1x128x256xf32, #tpu.memory_space<vmem>>, %arg3: memref<6x128xf32, #tpu.memory_space<vmem>>, %arg4: memref<6x3xf32, #tpu.memory_space<vmem>>, %arg5: memref<1x1x256xf32, #tpu.memory_space<vmem>>, %arg6: memref<1x5x256xf32, #tpu.memory_space<vmem>>) attributes {dimension_semantics = [#tpu.dimension_semantics<parallel>, #tpu.dimension_semantics<parallel>], iteration_bounds = array<i64: 2, 1>, scalar_prefetch = 0 : i64, scratch_operands = 0 : i64, tpu.core_type = #tpu.core_type<tc>, window_params = [{transform_indices = @transform_0, window_bounds = array<i64: 1, 128, 256>}, {pipeline_mode = #tpu.pipeline_mode<synchronous>, transform_indices = @transform_1, window_bounds = array<i64: 6, 128>}, {pipeline_mode = #tpu.pipeline_mode<synchronous>, transform_indices = @transform_2, window_bounds = array<i64: 6, 3>}, {transform_indices = @transform_3, window_bounds = array<i64: 1, 1, 256>}, {transform_indices = @transform_4, window_bounds = array<i64: 1, 5, 256>}]} {
    %c0 = arith.constant 0 : index
    %c0_0 = arith.constant 0 : index
    %0 = vector.load %arg3[%c0, %c0_0] : memref<6x128xf32, #tpu.memory_space<vmem>>, vector<6x128xf32>
    %c0_1 = arith.constant 0 : index
    %c0_2 = arith.constant 0 : index
    %c0_3 = arith.constant 0 : index
    %1 = vector.load %arg2[%c0_1, %c0_2, %c0_3] : memref<1x128x256xf32, #tpu.memory_space<vmem>>, vector<1x128x256xf32>
    %2 = vector.shape_cast %1 : vector<1x128x256xf32> to vector<128x256xf32>
    %cst = arith.constant dense<0.000000e+00> : vector<6x256xf32>
    %3 = tpu.matmul %0, %2, %cst {dimension_numbers = #tpu.dot_dimension_numbers<[1], [0], [0], [1], [0, 0, 1, 1], [], []>} : vector<6x128xf32>, vector<128x256xf32>, vector<6x256xf32> -> vector<6x256xf32>
    %c0_4 = arith.constant 0 : index
    %c0_5 = arith.constant 0 : index
    %4 = vector.load %arg4[%c0_4, %c0_5] : memref<6x3xf32, #tpu.memory_space<vmem>>, vector<6x3xf32>
    %5 = vector.extract_strided_slice %4 {offsets = [0, 0], sizes = [6, 1], strides = [1, 1]} : vector<6x3xf32> to vector<6x1xf32>
    %6 = vector.broadcast %5 : vector<6x1xf32> to vector<6x256xf32>
    %7 = arith.addf %3, %6 : vector<6x256xf32>
    %8 = arith.negf %7 : vector<6x256xf32>
    %9 = math.exp %8 : vector<6x256xf32>
    %cst_6 = arith.constant 1.000000e+00 : f32
    %10 = vector.broadcast %cst_6 : f32 to vector<6x256xf32>
    %11 = arith.addf %10, %9 : vector<6x256xf32>
    %12 = arith.divf %10, %11 : vector<6x256xf32>
    %13 = vector.extract_strided_slice %4 {offsets = [0, 1], sizes = [6, 1], strides = [1, 1]} : vector<6x3xf32> to vector<6x1xf32>
    %14 = vector.broadcast %13 : vector<6x1xf32> to vector<6x256xf32>
    %15 = arith.mulf %12, %14 : vector<6x256xf32>
    %16 = vector.extract_strided_slice %4 {offsets = [0, 2], sizes = [6, 1], strides = [1, 1]} : vector<6x3xf32> to vector<6x1xf32>
    %17 = vector.broadcast %16 : vector<6x1xf32> to vector<6x256xf32>
    %18 = arith.addf %15, %17 : vector<6x256xf32>
    %19 = vector.extract_strided_slice %18 {offsets = [0, 0], sizes = [1, 256], strides = [1, 1]} : vector<6x256xf32> to vector<1x256xf32>
    %c0_7 = arith.constant 0 : index
    %c0_8 = arith.constant 0 : index
    %c0_9 = arith.constant 0 : index
    %20 = vector.load %arg5[%c0_7, %c0_8, %c0_9] : memref<1x1x256xf32, #tpu.memory_space<vmem>>, vector<1x1x256xf32>
    %21 = vector.shape_cast %20 : vector<1x1x256xf32> to vector<1x256xf32>
    %22 = vector.shape_cast %19 : vector<1x256xf32> to vector<1x1x256xf32>
    tpu.vector_store %arg5[%c0_7, %c0_8, %c0_9], %22 {strides = array<i32>} : memref<1x1x256xf32, #tpu.memory_space<vmem>>, vector<1x1x256xf32>,
    %23 = vector.extract_strided_slice %18 {offsets = [1, 0], sizes = [5, 256], strides = [1, 1]} : vector<6x256xf32> to vector<5x256xf32>
    %c0_10 = arith.constant 0 : index
    %c0_11 = arith.constant 0 : index
    %c0_12 = arith.constant 0 : index
    %24 = vector.load %arg6[%c0_10, %c0_11, %c0_12] : memref<1x5x256xf32, #tpu.memory_space<vmem>>, vector<1x5x256xf32>
    %25 = vector.shape_cast %24 : vector<1x5x256xf32> to vector<5x256xf32>
    %26 = vector.shape_cast %23 : vector<5x256xf32> to vector<1x5x256xf32>
    tpu.vector_store %arg6[%c0_10, %c0_11, %c0_12], %26 {strides = array<i32>} : memref<1x5x256xf32, #tpu.memory_space<vmem>>, vector<1x5x256xf32>,
    return
  }
  func.func @transform_0(%arg0: i32, %arg1: i32) -> (i32, i32, i32) {
    %c0_i32 = arith.constant 0 : i32
    %c0_i32_0 = arith.constant 0 : i32
    return %arg0, %c0_i32, %arg1 : i32, i32, i32
  }
  func.func @transform_1(%arg0: i32, %arg1: i32) -> (i32, i32) {
    %c0_i32 = arith.constant 0 : i32
    %c0_i32_0 = arith.constant 0 : i32
    %c0_i32_1 = arith.constant 0 : i32
    return %c0_i32, %c0_i32_0 : i32, i32
  }
  func.func @transform_2(%arg0: i32, %arg1: i32) -> (i32, i32) {
    %c0_i32 = arith.constant 0 : i32
    %c0_i32_0 = arith.constant 0 : i32
    %c0_i32_1 = arith.constant 0 : i32
    return %c0_i32, %c0_i32_0 : i32, i32
  }
  func.func @transform_3(%arg0: i32, %arg1: i32) -> (i32, i32, i32) {
    %c0_i32 = arith.constant 0 : i32
    %c0_i32_0 = arith.constant 0 : i32
    return %arg0, %c0_i32, %arg1 : i32, i32, i32
  }
  func.func @transform_4(%arg0: i32, %arg1: i32) -> (i32, i32, i32) {
    %c0_i32 = arith.constant 0 : i32
    %c0_i32_0 = arith.constant 0 : i32
    return %arg0, %c0_i32, %arg1 : i32, i32, i32
  }
}

</mosaic_0001>

<llo_original>
// kernel: output_forward.1
$region0: #{output_forward.1}
  #allocation0 [shape = 'u32[]', space=smem, size = 0x4, offset = 0x4, fixed_abs, tag = 'smem constant byte address 0x4 - core index']
  #allocation1 [shape = 'u32[144,128]{1,0:T(1,128)}', space=vmem, size = 0x12000, scoped, tag = 'internal scratch']
  %s0 = inlined_call_operand.vmem [shape: f32[2,128,256], index: 0, kind: input, shape index: {}]
  %s1 = inlined_call_operand.vmem [shape: f32[6,128], index: 1, kind: input, shape index: {}]
  %s2 = inlined_call_operand.vmem [shape: f32[6,3], index: 2, kind: input, shape index: {}]
  %s3 = inlined_call_operand.vmem [shape: f32[2,1,256], index: 3, kind: output, shape index: {0}]
  %s4 = inlined_call_operand.vmem [shape: f32[2,5,256], index: 4, kind: output, shape index: {1}]
  %5 = xla_tuple %s3, %s4
  %s6 = sld [smem:[#allocation0]]
  $region53: #{output_forward.1} parent=0
    _
  %s8 = ssub.s32 1, %s6
  %s9 = scalar_select 0, %s8, %s6
  loop: start=0, step=1, limit=4
  $region2: #{output_forward.1} parent=0 // loop_pre_header
    _
  $region3: #{output_forward.1} parent=0 // loop_header
    %s11 = sphi 0, %s15
    %p12 = scmp.ge.s32.totalorder %s11, 4
    %s18 = sphi 0, %s30
    %s19 = sphi 0, %s26
    %s20 = sphi 0, %s18
    %s21 = sphi 0, %s19
    %s22 = sphi 0, %s20
    %s23 = sphi 0, %s21
    %s35 = sphi 0, %s37
    %s38 = sphi 0, %s35
    %s39 = sphi 0, %s38
    %s55 = sphi 0, %s39
    %s59 = sphi 0, %s59
    %s61 = sphi 0, %s59
    %s62 = sphi 0, %s61
    %s76 = sphi 0, %s62
    %s80 = sphi 0, %s80
    %s82 = sphi 0, %s80
    %s83 = sphi 0, %s82
    %s97 = sphi 0, %s83
    %s105 = sphi 0, %s107
    %s108 = sphi 0, %s105
    %s109 = sphi 0, %s108
    %s125 = sphi 0, %s109
    %s133 = sphi 0, %s135
    %s136 = sphi 0, %s133
    %s137 = sphi 0, %s136
    %s153 = sphi 0, %s137
  $region4: #{output_forward.1} parent=0 // loop_header_branch
    %14 = sbr.rel (%p12) target = $region8
  $region5: #{output_forward.1} parent=0 // loop_body
    %s16 = ssub.s32 %s11, 1
    %s17 = ssub.s32 %s11, 2
    %s24 = sadd.s32 1, %s19
    %p25 = scmp.ge.s32.totalorder %s24, 1
    %s26 = scalar_select %p25, 0, %s24
    %s27 = sadd.s32 1, %s18
    %s28 = scalar_select %p25, %s27, %s18
    %p29 = scmp.ge.s32.totalorder %s28, 2
    %s30 = scalar_select %p29, 0, %s28
    %s31 = ssub.s32 %s18, %s30
    %s32 = ssub.s32 %s19, %s26
    %s33 = sor.u32 %s31, %s32
    %p34 = scmp.eq.s32.totalorder %s33, 0
    %s36 = sadd.s32 %s35, 1
    %s37 = scalar_select %p34, %s35, %s36
    %p40 = pneg %p34
    %p41 = scmp.eq.s32.totalorder %s11, 1
    %p42 = por %p40, %p41
    %p43 = scmp.ne.s32.totalorder %s35, %s38
    %p44 = scmp.eq.s32.totalorder %s11, 0
    %p45 = por %p43, %p44
    %p46 = scmp.ne.s32.totalorder %s35, %s38
    %p47 = scmp.eq.s32.totalorder %s16, 1
    %p48 = por %p46, %p47
    %p49 = scmp.ne.s32.totalorder %s38, %s39
    %p50 = scmp.eq.s32.totalorder %s16, 0
    %p51 = por %p49, %p50
    %p52 = scmp.ne.s32.totalorder %s38, %s39
    %p53 = scmp.eq.s32.totalorder %s17, 1
    %p54 = por %p52, %p53
    %p56 = scmp.ne.s32.totalorder %s39, %s55
    %p57 = scmp.eq.s32.totalorder %s17, 0
    %p58 = por %p56, %p57
    %s60 = sadd.s32 %s59, 1
    %p63 = scmp.eq.s32.totalorder %s11, 1
    %p64 = scmp.ne.s32.totalorder %s59, %s61
    %p65 = scmp.eq.s32.totalorder %s11, 0
    %p66 = por %p64, %p65
    %p67 = scmp.ne.s32.totalorder %s59, %s61
    %p68 = scmp.eq.s32.totalorder %s16, 1
    %p69 = por %p67, %p68
    %p70 = scmp.ne.s32.totalorder %s61, %s62
    %p71 = scmp.eq.s32.totalorder %s16, 0
    %p72 = por %p70, %p71
    %p73 = scmp.ne.s32.totalorder %s61, %s62
    %p74 = scmp.eq.s32.totalorder %s17, 1
    %p75 = por %p73, %p74
    %p77 = scmp.ne.s32.totalorder %s62, %s76
    %p78 = scmp.eq.s32.totalorder %s17, 0
    %p79 = por %p77, %p78
    %s81 = sadd.s32 %s80, 1
    %p84 = scmp.eq.s32.totalorder %s11, 1
    %p85 = scmp.ne.s32.totalorder %s80, %s82
    %p86 = scmp.eq.s32.totalorder %s11, 0
    %p87 = por %p85, %p86
    %p88 = scmp.ne.s32.totalorder %s80, %s82
    %p89 = scmp.eq.s32.totalorder %s16, 1
    %p90 = por %p88, %p89
    %p91 = scmp.ne.s32.totalorder %s82, %s83
    %p92 = scmp.eq.s32.totalorder %s16, 0
    %p93 = por %p91, %p92
    %p94 = scmp.ne.s32.totalorder %s82, %s83
    %p95 = scmp.eq.s32.totalorder %s17, 1
    %p96 = por %p94, %p95
    %p98 = scmp.ne.s32.totalorder %s83, %s97
    %p99 = scmp.eq.s32.totalorder %s17, 0
    %p100 = por %p98, %p99
    %s101 = ssub.s32 %s18, %s30
    %s102 = ssub.s32 %s19, %s26
    %s103 = sor.u32 %s101, %s102
    %p104 = scmp.eq.s32.totalorder %s103, 0
    %s106 = sadd.s32 %s105, 1
    %s107 = scalar_select %p104, %s105, %s106
    %p110 = pneg %p104
    %p111 = scmp.eq.s32.totalorder %s11, 1
    %p112 = por %p110, %p111
    %p113 = scmp.ne.s32.totalorder %s105, %s108
    %p114 = scmp.eq.s32.totalorder %s11, 0
    %p115 = por %p113, %p114
    %p116 = scmp.ne.s32.totalorder %s105, %s108
    %p117 = scmp.eq.s32.totalorder %s16, 1
    %p118 = por %p116, %p117
    %p119 = scmp.ne.s32.totalorder %s108, %s109
    %p120 = scmp.eq.s32.totalorder %s16, 0
    %p121 = por %p119, %p120
    %p122 = scmp.ne.s32.totalorder %s108, %s109
    %p123 = scmp.eq.s32.totalorder %s17, 1
    %p124 = por %p122, %p123
    %p126 = scmp.ne.s32.totalorder %s109, %s125
    %p127 = scmp.eq.s32.totalorder %s17, 0
    %p128 = por %p126, %p127
    %s129 = ssub.s32 %s18, %s30
    %s130 = ssub.s32 %s19, %s26
    %s131 = sor.u32 %s129, %s130
    %p132 = scmp.eq.s32.totalorder %s131, 0
    %s134 = sadd.s32 %s133, 1
    %s135 = scalar_select %p132, %s133, %s134
    %p138 = pneg %p132
    %p139 = scmp.eq.s32.totalorder %s11, 1
    %p140 = por %p138, %p139
    %p141 = scmp.ne.s32.totalorder %s133, %s136
    %p142 = scmp.eq.s32.totalorder %s11, 0
    %p143 = por %p141, %p142
    %p144 = scmp.ne.s32.totalorder %s133, %s136
    %p145 = scmp.eq.s32.totalorder %s16, 1
    %p146 = por %p144, %p145
    %p147 = scmp.ne.s32.totalorder %s136, %s137
    %p148 = scmp.eq.s32.totalorder %s16, 0
    %p149 = por %p147, %p148
    %p150 = scmp.ne.s32.totalorder %s136, %s137
    %p151 = scmp.eq.s32.totalorder %s17, 1
    %p152 = por %p150, %p151
    %p154 = scmp.ne.s32.totalorder %s137, %s153
    %p155 = scmp.eq.s32.totalorder %s17, 0
    %p156 = por %p154, %p155
    %p157 = scmp.le.s32.totalorder 1, %s11
    %p158 = scmp.lt.s32.totalorder %s11, 3
    %p159 = pnand %p157, %p158
    %p160 = pneg %p159
    // Predicated region
    $region9: #{output_forward.1} parent=5 // pred_check
      _
    $region10: #{output_forward.1} parent=5 // pred_check_branch
      %162 = sbr.rel (%p159) target = $region12
    $region11: #{output_forward.1} parent=5 // pred_region
      %s163 = ssub.s32 %s11, 1
      // Predicated region
      $region13: #{output_forward.1} parent=11 // pred_check
        %p164 = pneg %p72
      $region14: #{output_forward.1} parent=11 // pred_check_branch
        %166 = sbr.rel (%p164) target = $region16
      $region15: #{output_forward.1} parent=11 // pred_region
        _
      $region16: #{output_forward.1} parent=11 // pred_fallthru
        _
      // Predicated region
      $region17: #{output_forward.1} parent=11 // pred_check
        %p167 = pneg %p93
      $region18: #{output_forward.1} parent=11 // pred_check_branch
        %169 = sbr.rel (%p167) target = $region20
      $region19: #{output_forward.1} parent=11 // pred_region
        _
      $region20: #{output_forward.1} parent=11 // pred_fallthru
        _
    $region12: #{output_forward.1} parent=5 // pred_fallthru
      _
    %p170 = scmp.lt.s32.totalorder %s11, 2
    // Predicated region
    $region21: #{output_forward.1} parent=5 // pred_check
      %p171 = pneg %p170
    $region22: #{output_forward.1} parent=5 // pred_check_branch
      %173 = sbr.rel (%p171) target = $region24
    $region23: #{output_forward.1} parent=5 // pred_region
      // Predicated region
      $region25: #{output_forward.1} parent=23 // pred_check
        %p174 = pneg %p45
      $region26: #{output_forward.1} parent=23 // pred_check_branch
        %176 = sbr.rel (%p174) target = $region28
      $region27: #{output_forward.1} parent=23 // pred_region
        %s177 = smul.u32 2, %s19
        %p178 = scmp.lt.s32.totalorder %s18, 1
        %s179 = scalar_select %p178, %s18, 1
        %p180 = scmp.lt.s32.totalorder %s177, 1
        %s181 = scalar_select %p180, %s177, 1
        %s182 = smul.addr %s179, 32
        %s183 = sadd.s32 %s181, %s182
        %s184 = smul.addr %s183, 8
        %s185 = scalar_lea.vmem %s0, %s184
        %s186 = smul.u32 2, %s19
      $region28: #{output_forward.1} parent=23 // pred_fallthru
        _
    $region24: #{output_forward.1} parent=5 // pred_fallthru
      _
    %p187 = scmp.le.s32.totalorder 1, %s11
    %p188 = scmp.lt.s32.totalorder %s11, 3
    %p189 = pnand %p187, %p188
    %p190 = pneg %p189
    // Predicated region
    $region29: #{output_forward.1} parent=5 // pred_check
      _
    $region30: #{output_forward.1} parent=5 // pred_check_branch
      %192 = sbr.rel (%p189) target = $region32
    $region31: #{output_forward.1} parent=5 // pred_region
      %s193 = ssub.s32 %s11, 1
      %s194 = smul.u32 2, %s21
      %p195 = scmp.lt.s32.totalorder %s20, 1
      %s196 = scalar_select %p195, %s20, 1
      %p197 = scmp.lt.s32.totalorder %s194, 1
      %s198 = scalar_select %p197, %s194, 1
      %s199 = smul.addr %s196, 32
      %s200 = sadd.s32 %s198, %s199
      %s201 = smul.addr %s200, 8
      %s202 = scalar_lea.vmem %s0, %s201
      %p203 = pneg %p51
      %p204 = pneg %p48
      %p205 = pneg %p72
      %p206 = pneg %p69
      %p207 = pneg %p93
      %p208 = pneg %p90
      %p209 = pneg %p121
      %p210 = pneg %p118
      %s211 = smul.u32 2, %s21
      %p212 = scmp.lt.s32.totalorder %s20, 1
      %s213 = scalar_select %p212, %s20, 1
      %p214 = scmp.lt.s32.totalorder %s211, 1
      %s215 = scalar_select %p214, %s211, 1
      %s216 = smul.addr %s213, 2
      %s217 = sadd.s32 %s215, %s216
      %s218 = scalar_lea.vmem %s3, %s217
      %p219 = pneg %p149
      %p220 = pneg %p146
      %s221 = smul.u32 2, %s21
      %p222 = scmp.lt.s32.totalorder %s20, 1
      %s223 = scalar_select %p222, %s20, 1
      %p224 = scmp.lt.s32.totalorder %s221, 1
      %s225 = scalar_select %p224, %s221, 1
      %s226 = smul.addr %s223, 2
      %s227 = sadd.s32 %s225, %s226
      %s228 = smul.addr %s227, 8
      %s229 = scalar_lea.vmem %s4, %s228
      %s230 = smul.u32 2, %s21
      %p231 = scmp.lt.s32.totalorder %s20, 1
      %s232 = scalar_select %p231, %s20, 1
      %p233 = scmp.lt.s32.totalorder %s230, 1
      %s234 = scalar_select %p233, %s230, 1
      %s235 = smul.addr %s232, 32
      %s236 = sadd.s32 %s234, %s235
      %s237 = smul.addr %s236, 8
      %s238 = scalar_lea.vmem %s0, %s237
      %s239 = smul.u32 2, %s21
      %s240 = smul.u32 2, %s21
      %p241 = scmp.lt.s32.totalorder %s20, 1
      %s242 = scalar_select %p241, %s20, 1
      %p243 = scmp.lt.s32.totalorder %s240, 1
      %s244 = scalar_select %p243, %s240, 1
      %s245 = smul.addr %s242, 2
      %s246 = sadd.s32 %s244, %s245
      %s247 = scalar_lea.vmem %s3, %s246
      %s248 = smul.u32 2, %s21
      %s249 = smul.u32 2, %s21
      %p250 = scmp.lt.s32.totalorder %s20, 1
      %s251 = scalar_select %p250, %s20, 1
      %p252 = scmp.lt.s32.totalorder %s249, 1
      %s253 = scalar_select %p252, %s249, 1
      %s254 = smul.addr %s251, 2
      %s255 = sadd.s32 %s253, %s254
      %s256 = smul.addr %s255, 8
      %s257 = scalar_lea.vmem %s4, %s256
      %s258 = smul.u32 2, %s21
      %v259 = vld [vmem:[%s1] sm:$0x3f]
      %v260 = vld [vmem:[%s238] sm:$0xff]
      %v261 = vld [vmem:[%s238 + $0x8] sm:$0xff]
      %v262 = vld [vmem:[%s238 + $0x10] sm:$0xff]
      %v263 = vld [vmem:[%s238 + $0x18] sm:$0xff]
      %v264 = vld [vmem:[%s238 + $0x20] sm:$0xff]
      %v265 = vld [vmem:[%s238 + $0x28] sm:$0xff]
      %v266 = vld [vmem:[%s238 + $0x30] sm:$0xff]
      %v267 = vld [vmem:[%s238 + $0x38] sm:$0xff]
      %v268 = vld [vmem:[%s238 + $0x40] sm:$0xff]
      %v269 = vld [vmem:[%s238 + $0x48] sm:$0xff]
      %v270 = vld [vmem:[%s238 + $0x50] sm:$0xff]
      %v271 = vld [vmem:[%s238 + $0x58] sm:$0xff]
      %v272 = vld [vmem:[%s238 + $0x60] sm:$0xff]
      %v273 = vld [vmem:[%s238 + $0x68] sm:$0xff]
      %v274 = vld [vmem:[%s238 + $0x70] sm:$0xff]
      %v275 = vld [vmem:[%s238 + $0x78] sm:$0xff]
      %v276 = vld [vmem:[%s238 + $0x80] sm:$0xff]
      %v277 = vld [vmem:[%s238 + $0x88] sm:$0xff]
      %v278 = vld [vmem:[%s238 + $0x90] sm:$0xff]
      %v279 = vld [vmem:[%s238 + $0x98] sm:$0xff]
      %v280 = vld [vmem:[%s238 + $0xa0] sm:$0xff]
      %v281 = vld [vmem:[%s238 + $0xa8] sm:$0xff]
      %v282 = vld [vmem:[%s238 + $0xb0] sm:$0xff]
      %v283 = vld [vmem:[%s238 + $0xb8] sm:$0xff]
      %v284 = vld [vmem:[%s238 + $0xc0] sm:$0xff]
      %v285 = vld [vmem:[%s238 + $0xc8] sm:$0xff]
      %v286 = vld [vmem:[%s238 + $0xd0] sm:$0xff]
      %v287 = vld [vmem:[%s238 + $0xd8] sm:$0xff]
      %v288 = vld [vmem:[%s238 + $0xe0] sm:$0xff]
      %v289 = vld [vmem:[%s238 + $0xe8] sm:$0xff]
      %v290 = vld [vmem:[%s238 + $0xf0] sm:$0xff]
      %v291 = vld [vmem:[%s238 + $0xf8] sm:$0xff]
      %v292 = vld [vmem:[%s2] sm:$0x3f]
      %294 = vset.pattern.permute.xlu0 0
      %295 = vperm.xlu0 %294, %v292
      %v296 = vpop.permute.xlu0 %295
      %298 = vmatprep.subr.mxu0 %v261
      %299 = vmatpush1.msra.mxu0 %v260
      %300 = vmatprep.subr.mxu0 %v263
      %301 = vmatpush1.msra.mxu0 %v262
      %302 = vmatprep.subr.mxu0 %v265
      %303 = vmatpush1.msra.mxu0 %v264
      %304 = vmatprep.subr.mxu0 %v267
      %305 = vmatpush1.msra.mxu0 %v266
      %306 = vmatprep.subr.mxu0 %v269
      %307 = vmatpush1.msra.mxu0 %v268
      %308 = vmatprep.subr.mxu0 %v271
      %309 = vmatpush1.msra.mxu0 %v270
      %310 = vmatprep.subr.mxu0 %v273
      %311 = vmatpush1.msra.mxu0 %v272
      %312 = vmatprep.subr.mxu0 %v275
      %313 = vmatpush1.msra.mxu0 %v274
      %314 = vmatprep.subr.mxu0 %v277
      %315 = vmatpush1.msra.mxu0 %v276
      %316 = vmatprep.subr.mxu0 %v279
      %317 = vmatpush1.msra.mxu0 %v278
      %318 = vmatprep.subr.mxu0 %v281
      %319 = vmatpush1.msra.mxu0 %v280
      %320 = vmatprep.subr.mxu0 %v283
      %321 = vmatpush1.msra.mxu0 %v282
      %322 = vmatprep.subr.mxu0 %v285
      %323 = vmatpush1.msra.mxu0 %v284
      %324 = vmatprep.subr.mxu0 %v287
      %325 = vmatpush1.msra.mxu0 %v286
      %326 = vmatprep.subr.mxu0 %v289
      %327 = vmatpush1.msra.mxu0 %v288
      %328 = vmatprep.subr.mxu0 %v291
      %329 = vmatpush1.msra.mxu0 %v290
      %330 = vmatprep.subr.mxu0 0.0
      %331 = vmatpush1.msra.mxu0 0.0
      %332 = vmatprep.subr.mxu0 0.0
      %333 = vmatpush1.msra.mxu0 0.0
      %334 = vmatprep.subr.mxu0 0.0
      %335 = vmatpush1.msra.mxu0 0.0
      %336 = vmatprep.subr.mxu0 0.0
      %337 = vmatpush1.msra.mxu0 0.0
      %338 = vmatprep.subr.mxu0 0.0
      %339 = vmatpush1.msra.mxu0 0.0
      %340 = vmatprep.subr.mxu0 0.0
      %341 = vmatpush1.msra.mxu0 0.0
      %342 = vmatprep.subr.mxu0 0.0
      %343 = vmatpush1.msra.mxu0 0.0
      %344 = vmatprep.subr.mxu0 0.0
      %345 = vmatpush1.msra.mxu0 0.0
      %346 = vmatprep.subr.mxu0 0.0
      %347 = vmatpush1.msra.mxu0 0.0
      %348 = vmatprep.subr.mxu0 0.0
      %349 = vmatpush1.msra.mxu0 0.0
      %350 = vmatprep.subr.mxu0 0.0
      %351 = vmatpush1.msra.mxu0 0.0
      %352 = vmatprep.subr.mxu0 0.0
      %353 = vmatpush1.msra.mxu0 0.0
      %354 = vmatprep.subr.mxu0 0.0
      %355 = vmatpush1.msra.mxu0 0.0
      %356 = vmatprep.subr.mxu0 0.0
      %357 = vmatpush1.msra.mxu0 0.0
      %358 = vmatprep.subr.mxu0 0.0
      %359 = vmatpush1.msra.mxu0 0.0
      %360 = vmatprep.subr.mxu0 0.0
      %361 = vmatpush1.msra.mxu0 0.0
      %362 = vmatprep.mubr.f32.mxu0 0.0
      %363 = vmatmul.mubr.f32.gmra.mrb[0].mxu0 %v259
      %v364 = vpop.f32.mrb[0].mxu0
      %v365 = vadd.f32 %v296, %v364
      %v366 = vpop.f32.mrb[0].mxu0
      %v367 = vadd.f32 %v296, %v366
      %368 = vdwg.mxu0
      %v369 = vxor.u32 %v365, 2147483648
      %v370 = vxor.u32 %v367, 2147483648
      %v371 = vmul.f32 %v369, 1.442695
      %v372 = vpow.pop %v371
      %v373 = vmul.f32 %v370, 1.442695
      %v374 = vpow.pop %v373
      %v375 = vadd.f32 %v372, 1.0
      %v376 = vadd.f32 %v374, 1.0
      %v377 = vrcp.pop %v375
      %v378 = vmul.f32 1.0, %v377
      %v379 = vrcp.pop %v376
      %v380 = vmul.f32 1.0, %v379
      %381 = vset.pattern.permute.xlu0 1
      %382 = vperm.xlu0 %381, %v292
      %v383 = vpop.permute.xlu0 %382
      %v385 = vmul.f32 %v378, %v383
      %v386 = vmul.f32 %v380, %v383
      %387 = vset.pattern.permute.xlu0 2
      %388 = vperm.xlu0 %387, %v292
      %v389 = vpop.permute.xlu0 %388
      %v391 = vadd.f32 %v385, %v389
      %v392 = vadd.f32 %v386, %v389
      %v395 = vcombine.low %v391, %v392
      %v397 = vunpack.c.l.s4 1966171168
      %v398 = vunpack.c.0.s8 %v397
      %v399 = vlaneseq
      %v400 = vshrl.u32 %v399, 7
      %v401 = vsub.s32 %v398, %v400
      %v402 = vrot.slane %v395, %v401
      %v404 = vunpack.c.l.s4 1966171168
      %v405 = vunpack.c.0.s8 %v404
      %v406 = vlaneseq
      %v407 = vshrl.u32 %v406, 7
      %v408 = vsub.s32 %v405, %v407
      %v409 = vrot.slane %v402, %v408
      %v411 = vlaneseq
      %vm412 = vcmp.ge.s32.totalorder %v411, 0
      %vm413 = vcmp.lt.s32.totalorder %v411, 256
      %vm414 = vmand %vm412, %vm413
      %415 = vst.msk [vmem:[%s247] sm:$0x3] %vm414, %v409
      %v416 = vrot.slane %v391, 1
      %v417 = vrot.slane %v392, 1
      %420 = vst [vmem:[%s257] sm:$0x1f] %v416
      %421 = vst [vmem:[%s257 + $0x8] sm:$0x1f] %v417
      %s422 = smul.u32 2, %s21
      %p423 = scmp.lt.s32.totalorder %s20, 1
      %s424 = scalar_select %p423, %s20, 1
      %p425 = scmp.lt.s32.totalorder %s422, 1
      %s426 = scalar_select %p425, %s422, 1
      %s427 = smul.addr %s424, 2
      %s428 = sadd.s32 %s426, %s427
      %s429 = scalar_lea.vmem %s3, %s428
      %s430 = smul.u32 2, %s21
      %p431 = scmp.lt.s32.totalorder %s20, 1
      %s432 = scalar_select %p431, %s20, 1
      %p433 = scmp.lt.s32.totalorder %s430, 1
      %s434 = scalar_select %p433, %s430, 1
      %s435 = smul.addr %s432, 2
      %s436 = sadd.s32 %s434, %s435
      %s437 = smul.addr %s436, 8
      %s438 = scalar_lea.vmem %s4, %s437
      // Predicated region
      $region33: #{output_forward.1} parent=31 // pred_check
        %p439 = pneg %p118
      $region34: #{output_forward.1} parent=31 // pred_check_branch
        %441 = sbr.rel (%p439) target = $region36
      $region35: #{output_forward.1} parent=31 // pred_region
        %s442 = smul.u32 2, %s21
      $region36: #{output_forward.1} parent=31 // pred_fallthru
        _
      // Predicated region
      $region37: #{output_forward.1} parent=31 // pred_check
        %p443 = pneg %p146
      $region38: #{output_forward.1} parent=31 // pred_check_branch
        %445 = sbr.rel (%p443) target = $region40
      $region39: #{output_forward.1} parent=31 // pred_region
        %s446 = smul.u32 2, %s21
      $region40: #{output_forward.1} parent=31 // pred_fallthru
        _
    $region32: #{output_forward.1} parent=5 // pred_fallthru
      _
    %p447 = scmp.le.s32.totalorder 2, %s11
    // Predicated region
    $region41: #{output_forward.1} parent=5 // pred_check
      %p448 = pneg %p447
    $region42: #{output_forward.1} parent=5 // pred_check_branch
      %450 = sbr.rel (%p448) target = $region44
    $region43: #{output_forward.1} parent=5 // pred_region
      %s451 = ssub.s32 %s11, 2
      // Predicated region
      $region45: #{output_forward.1} parent=43 // pred_check
        %p452 = pneg %p124
      $region46: #{output_forward.1} parent=43 // pred_check_branch
        %454 = sbr.rel (%p452) target = $region48
      $region47: #{output_forward.1} parent=43 // pred_region
        %s455 = smul.u32 2, %s23
        %p456 = scmp.lt.s32.totalorder %s22, 1
        %s457 = scalar_select %p456, %s22, 1
        %p458 = scmp.lt.s32.totalorder %s455, 1
        %s459 = scalar_select %p458, %s455, 1
        %s460 = smul.addr %s457, 2
        %s461 = sadd.s32 %s459, %s460
        %s462 = scalar_lea.vmem %s3, %s461
      $region48: #{output_forward.1} parent=43 // pred_fallthru
        _
      // Predicated region
      $region49: #{output_forward.1} parent=43 // pred_check
        %p463 = pneg %p152
      $region50: #{output_forward.1} parent=43 // pred_check_branch
        %465 = sbr.rel (%p463) target = $region52
      $region51: #{output_forward.1} parent=43 // pred_region
        %s466 = smul.u32 2, %s23
        %p467 = scmp.lt.s32.totalorder %s22, 1
        %s468 = scalar_select %p467, %s22, 1
        %p469 = scmp.lt.s32.totalorder %s466, 1
        %s470 = scalar_select %p469, %s466, 1
        %s471 = smul.addr %s468, 2
        %s472 = sadd.s32 %s470, %s471
        %s473 = smul.addr %s472, 8
        %s474 = scalar_lea.vmem %s4, %s473
      $region52: #{output_forward.1} parent=43 // pred_fallthru
        _
    $region44: #{output_forward.1} parent=5 // pred_fallthru
      _
  $region6: #{output_forward.1} parent=0 // loop_footer
    %s15 = sadd.s32 1, %s11
  $region7: #{output_forward.1} parent=0 // loop_footer_branch
    %10 = sbr.rel target = $region3
  $region8: #{output_forward.1} parent=0 // loop_exit
    _

</llo_original>
